<compile_context>
chip_gen: v5e
topology: v5e:2x2
jax: 0.10.0
libtpu: 0.0.40
codegen_flags: <defaults>
</compile_context>

<pallas_src>
import functools

import jax
import jax.numpy as jnp
from jax.experimental import pallas as pl
from jax.experimental.pallas import tpu as pltpu


def _hardswish(v):
    return v * jnp.clip(v + 3.0, 0.0, 6.0) * (1.0 / 6.0)


def _csp_kernel(x_ref, w13_ref, b1_ref, ws1_ref, bs1_ref, ws2_ref, bs2_ref,
                w2_ref, bbn1_ref, bbn2_ref, w4a_ref, w4b_ref, b4_ref, o_ref,
                *, shortcut, c_half):
    # x_ref:    (1, C1, TM) activation tile, channels-first, lanes = pixels
    # w13_ref:  (C1, C1) bf16; rows [:c_half] = conv1 (BN-scale folded),
    #                          rows [c_half:] = conv3 (post-cat BN scale folded)
    # ws*/w2/w4a/w4b: bf16 1x1 conv weights (BN scale folded into rows)
    # b*_ref:   (Cout, 1) f32 folded BN biases
    # bbn1/2:   (C_, 1)   post-concat BN bias halves (scale already in w2/w3)
    # o_ref:    (1, C1, TM)
    x = x_ref[0]                                              # (C1, TM)
    xb = x.astype(jnp.bfloat16)

    # Fused conv1 + conv3: a single MXU pass over x, split on sublanes.
    f = jnp.dot(w13_ref[...], xb, preferred_element_type=jnp.float32)
    h1 = _hardswish(f[:c_half] + b1_ref[...])                 # conv1 + BN + hswish
    csp2 = f[c_half:]                                         # conv3 (bn-scaled)

    # shot1 / shot2 (Conv blocks on c1//2 channels)
    t = _hardswish(jnp.dot(ws1_ref[...], h1.astype(jnp.bfloat16),
                           preferred_element_type=jnp.float32) + bs1_ref[...])
    t = _hardswish(jnp.dot(ws2_ref[...], t.astype(jnp.bfloat16),
                           preferred_element_type=jnp.float32) + bs2_ref[...])
    if shortcut:
        t = h1 + t

    # conv2: bias-free 1x1 conv (post-concat BN scale pre-folded)
    csp1 = jnp.dot(w2_ref[...], t.astype(jnp.bfloat16),
                   preferred_element_type=jnp.float32)

    # Post-concat BN bias + LeakyReLU(0.1) per half (no channel concat).
    y1 = csp1 + bbn1_ref[...]
    y1 = jnp.maximum(y1, 0.1 * y1)
    y2 = csp2 + bbn2_ref[...]
    y2 = jnp.maximum(y2, 0.1 * y2)

    # conv4 split along K: w4 @ cat([y1, y2]) == w4[:, :c_]@y1 + w4[:, c_:]@y2
    out = jnp.dot(w4a_ref[...], y1.astype(jnp.bfloat16),
                  preferred_element_type=jnp.float32)
    out = out + jnp.dot(w4b_ref[...], y2.astype(jnp.bfloat16),
                        preferred_element_type=jnp.float32)
    out = _hardswish(out + b4_ref[...])
    o_ref[0] = out.astype(o_ref.dtype)


def _pick_tile(m, c1, n_batch, budget_bytes=32 << 20, cap=4096):
    """Pixel tile: multiple of 128, sized against the FULL per-step VMEM
    footprint (~10 live f32 (c1, tm)-sized slabs: double-buffered input and
    output blocks plus matmul/epilogue temporaries)."""
    per_lane = 10 * 4 * c1
    tm_max = max(128, min(cap, (budget_bytes // per_lane) // 128 * 128))
    m128 = pl.cdiv(m, 128) * 128

    tm, best_tm, best_pad = None, 128, None
    cand = tm_max
    while cand >= 128:
        padded = pl.cdiv(m128, cand) * cand
        if best_pad is None or padded < best_pad:
            best_tm, best_pad = cand, padded
        if padded - m128 <= m128 // 32:          # accept < ~3% padding waste
            tm = cand
            break
        cand -= 128
    if tm is None:
        tm = best_tm

    # v7x has 2 TensorCores: keep >= 2 "parallel" grid steps when possible.
    while n_batch * pl.cdiv(m128, tm) < 2 and tm > 128:
        tm = max(128, ((tm // 2) // 128) * 128)

    m_pad = pl.cdiv(m128, tm) * tm
    return tm, m_pad


def bottleneck_csp_forward(x, params, *, shortcut=True, eps=1e-5):
    """x: (N, C1, H, W). params: dict of 1x1 conv weights / eval-mode BN tuples."""
    n, c1, h, w = x.shape
    assert c1 % 2 == 0, "BottleneckCSP requires an even channel count (c2 == c1)"
    c_ = c1 // 2
    m = h * w

    f32, bf16 = jnp.float32, jnp.bfloat16

    def fold(w_conv, bn):
        gamma, beta, mean, var = bn
        w2d = w_conv.reshape(w_conv.shape[0], w_conv.shape[1]).astype(f32)
        scale = gamma / jnp.sqrt(var + eps)
        return w2d * scale[:, None], ((beta - mean * scale)[:, None]).astype(f32)

    w1f, b1 = fold(params["conv1_w"], params["conv1_bn"])
    ws1f, bs1 = fold(params["shot1_w"], params["shot1_bn"])
    ws2f, bs2 = fold(params["shot2_w"], params["shot2_bn"])
    w4f, b4 = fold(params["conv4_w"], params["conv4_bn"])

    # Post-concat BN: fold its scale into conv2 (top half) / conv3 (bottom half).
    g, be, mu, var = params["bn"]
    s_bn = g / jnp.sqrt(var + eps)
    bbn = ((be - mu * s_bn)[:, None]).astype(f32)                     # (c1, 1)
    w2f = params["conv2_w"].reshape(c_, c_).astype(f32) * s_bn[:c_, None]
    w3f = params["conv3_w"].reshape(c_, c1).astype(f32) * s_bn[c_:, None]

    # bf16 MXU operands (all folding done above in f32); biases stay f32.
    w13 = jnp.concatenate([w1f, w3f], axis=0).astype(bf16)            # (c1, c1)
    ws1b, ws2b, w2b = ws1f.astype(bf16), ws2f.astype(bf16), w2f.astype(bf16)
    w4a = w4f[:, :c_].astype(bf16)                                    # (c1, c_)
    w4b = w4f[:, c_:].astype(bf16)                                    # (c1, c_)
    bbn1, bbn2 = bbn[:c_], bbn[c_:]

    tm, m_pad = _pick_tile(m, c1, n)
    grid = (n, m_pad // tm)

    x3 = x.reshape(n, c1, m)                     # free reshape (no transpose)
    if m_pad != m:                               # lane-pad; sliced off below
        x3 = jnp.pad(x3, ((0, 0), (0, 0), (0, m_pad - m)))

    def resident(shape):
        return pl.BlockSpec(shape, lambda b, i: (0,) * len(shape))

    itemsize = jnp.dtype(x.dtype).itemsize
    wgt_bytes = 2 * (c1 * c1 + 3 * c_ * c_ + 2 * c1 * c_)             # bf16
    bias_bytes = 4 * (3 * c_ + 2 * c1)
    act_bytes = 10 * 4 * c1 * tm                 # dbuf in/out + f32 temporaries
    vmem_limit = int(min(48 << 20,
                         max(16 << 20,
                             act_bytes + 2 * (wgt_bytes + bias_bytes) + (2 << 20))))

    flops = 2 * n * m_pad * (2 * c1 * c1 + 3 * c_ * c_)
    cost = pl.CostEstimate(
        flops=flops, transcendentals=0,
        bytes_accessed=2 * itemsize * n * m_pad * c1 + wgt_bytes + bias_bytes)

    out3 = pl.pallas_call(
        functools.partial(_csp_kernel, shortcut=shortcut, c_half=c_),
        out_shape=jax.ShapeDtypeStruct((n, c1, m_pad), x.dtype),
        grid_spec=pltpu.PrefetchScalarGridSpec(
            num_scalar_prefetch=0,
            grid=grid,
            in_specs=[
                pl.BlockSpec((1, c1, tm), lambda b, i: (b, 0, i)),    # activations
                resident((c1, c1)),                                   # conv1+conv3 fused
                resident((c_, 1)),                                    # conv1 folded bias
                resident((c_, c_)), resident((c_, 1)),                # shot1 (folded)
                resident((c_, c_)), resident((c_, 1)),                # shot2 (folded)
                resident((c_, c_)),                                   # conv2 (bn-scaled)
                resident((c_, 1)), resident((c_, 1)),                 # post-cat BN bias halves
                resident((c1, c_)), resident((c1, c_)),               # conv4 split along K
                resident((c1, 1)),                                    # conv4 folded bias
            ],
            out_specs=pl.BlockSpec((1, c1, tm), lambda b, i: (b, 0, i)),
        ),
        compiler_params=pltpu.CompilerParams(
            dimension_semantics=("parallel", "parallel"),
            vmem_limit_bytes=vmem_limit),
        cost_estimate=cost,
    )(x3, w13, b1, ws1b, bs1, ws2b, bs2, w2b, bbn1, bbn2, w4a, w4b, b4)

    if m_pad != m:
        out3 = out3[:, :, :m]
    return out3.reshape(n, c1, h, w)


if __name__ == "__main__":
    # Small shapes consistent with the module: batch=2, c1=16 (even), spatial=16.
    n, c1, h, w = 2, 16, 16, 16
    c_ = c1 // 2

    key = jax.random.PRNGKey(0)
    keys = jax.random.split(key, 12)
    x = jax.random.normal(keys[0], (n, c1, h, w), dtype=jnp.float32)

    def rand_w(k, co, ci):
        return jax.random.normal(k, (co, ci, 1, 1), dtype=jnp.float32) * 0.1

    def rand_bn(k, c):  # non-trivial eval-mode running stats (exercises folding)
        k1, k2, k3, k4 = jax.random.split(k, 4)
        gamma = 1.0 + 0.2 * jax.random.normal(k1, (c,), jnp.float32)
        beta = 0.1 * jax.random.normal(k2, (c,), jnp.float32)
        mean = 0.1 * jax.random.normal(k3, (c,), jnp.float32)
        var = 0.5 + jax.random.uniform(k4, (c,), jnp.float32)
        return (gamma, beta, mean, var)

    params = {
        "conv1_w": rand_w(keys[1], c_, c1), "conv1_bn": rand_bn(keys[2], c_),
        "shot1_w": rand_w(keys[3], c_, c_), "shot1_bn": rand_bn(keys[4], c_),
        "shot2_w": rand_w(keys[5], c_, c_), "shot2_bn": rand_bn(keys[6], c_),
        "conv2_w": rand_w(keys[7], c_, c_),
        "conv3_w": rand_w(keys[8], c_, c1),
        "bn": rand_bn(keys[9], c1),
        "conv4_w": rand_w(keys[10], c1, c1), "conv4_bn": rand_bn(keys[11], c1),
    }

    # ---- pure-JAX reference of the same (eval-mode BN) math ----
    def conv1x1_ref(xn, wc):
        return jnp.einsum("nchw,oc->nohw", xn, wc.reshape(wc.shape[0], wc.shape[1]))

    def bn_ref(xn, gamma, beta, mean, var, eps=1e-5):
        s = gamma / jnp.sqrt(var + eps)
        return xn * s[None, :, None, None] + (beta - mean * s)[None, :, None, None]

    def conv_block_ref(xn, wc, bn):
        y = bn_ref(conv1x1_ref(xn, wc), *bn)
        return y * jnp.clip(y + 3.0, 0.0, 6.0) / 6.0

    def ref_forward(xn, p, shortcut):
        csp1 = conv_block_ref(xn, p["conv1_w"], p["conv1_bn"])
        inner = conv_block_ref(
            conv_block_ref(csp1, p["shot1_w"], p["shot1_bn"]),
            p["shot2_w"], p["shot2_bn"])
        csp1 = csp1 + inner if shortcut else inner
        csp1 = conv1x1_ref(csp1, p["conv2_w"])
        csp2 = conv1x1_ref(xn, p["conv3_w"])
        cat = jnp.concatenate([csp1, csp2], axis=1)
        yb = bn_ref(cat, *p["bn"])
        yb = jnp.where(yb > 0, yb, 0.1 * yb)
        return conv_block_ref(yb, p["conv4_w"], p["conv4_bn"])

    for sc in (True, False):
        out = bottleneck_csp_forward(x, params, shortcut=sc)
        out = jax.block_until_ready(out)
        ref = ref_forward(x, params, shortcut=sc)
        assert out.shape == (n, c1, h, w), out.shape
        # bf16 MXU operands (f32 accumulation) -> loosened tolerance vs f32 ref.
        assert jnp.allclose(out, ref, atol=3e-2, rtol=3e-2), float(
            jnp.max(jnp.abs(out - ref)))

    print("KERNEL_OK")
</pallas_src>

<mosaic_0001>
module attributes {stable_mosaic.version = 11 : i64} {
  func.func @_csp_kernel(%arg0: i32, %arg1: i32, %arg2: memref<1x16x256xf32, #tpu.memory_space<vmem>>, %arg3: memref<16x16xbf16, #tpu.memory_space<vmem>>, %arg4: memref<8x1xf32, #tpu.memory_space<vmem>>, %arg5: memref<8x8xbf16, #tpu.memory_space<vmem>>, %arg6: memref<8x1xf32, #tpu.memory_space<vmem>>, %arg7: memref<8x8xbf16, #tpu.memory_space<vmem>>, %arg8: memref<8x1xf32, #tpu.memory_space<vmem>>, %arg9: memref<8x8xbf16, #tpu.memory_space<vmem>>, %arg10: memref<8x1xf32, #tpu.memory_space<vmem>>, %arg11: memref<8x1xf32, #tpu.memory_space<vmem>>, %arg12: memref<16x8xbf16, #tpu.memory_space<vmem>>, %arg13: memref<16x8xbf16, #tpu.memory_space<vmem>>, %arg14: memref<16x1xf32, #tpu.memory_space<vmem>>, %arg15: memref<1x16x256xf32, #tpu.memory_space<vmem>>) attributes {dimension_semantics = [#tpu.dimension_semantics<parallel>, #tpu.dimension_semantics<parallel>], iteration_bounds = array<i64: 2, 1>, scalar_prefetch = 0 : i64, scratch_operands = 0 : i64, tpu.core_type = #tpu.core_type<tc>, window_params = [{transform_indices = @transform_0, window_bounds = array<i64: 1, 16, 256>}, {pipeline_mode = #tpu.pipeline_mode<synchronous>, transform_indices = @transform_1, window_bounds = array<i64: 16, 16>}, {pipeline_mode = #tpu.pipeline_mode<synchronous>, transform_indices = @transform_2, window_bounds = array<i64: 8, 1>}, {pipeline_mode = #tpu.pipeline_mode<synchronous>, transform_indices = @transform_3, window_bounds = array<i64: 8, 8>}, {pipeline_mode = #tpu.pipeline_mode<synchronous>, transform_indices = @transform_4, window_bounds = array<i64: 8, 1>}, {pipeline_mode = #tpu.pipeline_mode<synchronous>, transform_indices = @transform_5, window_bounds = array<i64: 8, 8>}, {pipeline_mode = #tpu.pipeline_mode<synchronous>, transform_indices = @transform_6, window_bounds = array<i64: 8, 1>}, {pipeline_mode = #tpu.pipeline_mode<synchronous>, transform_indices = @transform_7, window_bounds = array<i64: 8, 8>}, {pipeline_mode = #tpu.pipeline_mode<synchronous>, transform_indices = @transform_8, window_bounds = array<i64: 8, 1>}, {pipeline_mode = #tpu.pipeline_mode<synchronous>, transform_indices = @transform_9, window_bounds = array<i64: 8, 1>}, {pipeline_mode = #tpu.pipeline_mode<synchronous>, transform_indices = @transform_10, window_bounds = array<i64: 16, 8>}, {pipeline_mode = #tpu.pipeline_mode<synchronous>, transform_indices = @transform_11, window_bounds = array<i64: 16, 8>}, {pipeline_mode = #tpu.pipeline_mode<synchronous>, transform_indices = @transform_12, window_bounds = array<i64: 16, 1>}, {transform_indices = @transform_13, window_bounds = array<i64: 1, 16, 256>}]} {
    %c0 = arith.constant 0 : index
    %c0_0 = arith.constant 0 : index
    %c0_1 = arith.constant 0 : index
    %0 = vector.load %arg2[%c0, %c0_0, %c0_1] : memref<1x16x256xf32, #tpu.memory_space<vmem>>, vector<1x16x256xf32>
    %1 = vector.shape_cast %0 : vector<1x16x256xf32> to vector<16x256xf32>
    %2 = arith.truncf %1 : vector<16x256xf32> to vector<16x256xbf16>
    %c0_2 = arith.constant 0 : index
    %c0_3 = arith.constant 0 : index
    %3 = vector.load %arg3[%c0_2, %c0_3] : memref<16x16xbf16, #tpu.memory_space<vmem>>, vector<16x16xbf16>
    %cst = arith.constant dense<0.000000e+00> : vector<16x256xf32>
    %4 = tpu.matmul %3, %2, %cst {dimension_numbers = #tpu.dot_dimension_numbers<[1], [0], [0], [1], [0, 0, 1, 1], [], []>} : vector<16x16xbf16>, vector<16x256xbf16>, vector<16x256xf32> -> vector<16x256xf32>
    %5 = vector.extract_strided_slice %4 {offsets = [0, 0], sizes = [8, 256], strides = [1, 1]} : vector<16x256xf32> to vector<8x256xf32>
    %c0_4 = arith.constant 0 : index
    %c0_5 = arith.constant 0 : index
    %6 = vector.load %arg4[%c0_4, %c0_5] : memref<8x1xf32, #tpu.memory_space<vmem>>, vector<8x1xf32>
    %7 = vector.broadcast %6 : vector<8x1xf32> to vector<8x256xf32>
    %8 = arith.addf %5, %7 : vector<8x256xf32>
    %cst_6 = arith.constant 3.000000e+00 : f32
    %9 = vector.broadcast %cst_6 : f32 to vector<8x256xf32>
    %10 = arith.addf %8, %9 : vector<8x256xf32>
    %cst_7 = arith.constant 0.000000e+00 : f32
    %cst_8 = arith.constant 6.000000e+00 : f32
    %11 = vector.broadcast %cst_7 : f32 to vector<8x256xf32>
    %12 = arith.maximumf %11, %10 : vector<8x256xf32>
    %13 = vector.broadcast %cst_8 : f32 to vector<8x256xf32>
    %14 = arith.minimumf %13, %12 : vector<8x256xf32>
    %15 = arith.mulf %8, %14 : vector<8x256xf32>
    %cst_9 = arith.constant 0.166666672 : f32
    %16 = vector.broadcast %cst_9 : f32 to vector<8x256xf32>
    %17 = arith.mulf %15, %16 : vector<8x256xf32>
    %18 = vector.extract_strided_slice %4 {offsets = [8, 0], sizes = [8, 256], strides = [1, 1]} : vector<16x256xf32> to vector<8x256xf32>
    %c0_10 = arith.constant 0 : index
    %c0_11 = arith.constant 0 : index
    %19 = vector.load %arg5[%c0_10, %c0_11] : memref<8x8xbf16, #tpu.memory_space<vmem>>, vector<8x8xbf16>
    %20 = arith.truncf %17 : vector<8x256xf32> to vector<8x256xbf16>
    %cst_12 = arith.constant dense<0.000000e+00> : vector<8x256xf32>
    %21 = tpu.matmul %19, %20, %cst_12 {dimension_numbers = #tpu.dot_dimension_numbers<[1], [0], [0], [1], [0, 0, 1, 1], [], []>} : vector<8x8xbf16>, vector<8x256xbf16>, vector<8x256xf32> -> vector<8x256xf32>
    %c0_13 = arith.constant 0 : index
    %c0_14 = arith.constant 0 : index
    %22 = vector.load %arg6[%c0_13, %c0_14] : memref<8x1xf32, #tpu.memory_space<vmem>>, vector<8x1xf32>
    %23 = vector.broadcast %22 : vector<8x1xf32> to vector<8x256xf32>
    %24 = arith.addf %21, %23 : vector<8x256xf32>
    %cst_15 = arith.constant 3.000000e+00 : f32
    %25 = vector.broadcast %cst_15 : f32 to vector<8x256xf32>
    %26 = arith.addf %24, %25 : vector<8x256xf32>
    %cst_16 = arith.constant 0.000000e+00 : f32
    %cst_17 = arith.constant 6.000000e+00 : f32
    %27 = vector.broadcast %cst_16 : f32 to vector<8x256xf32>
    %28 = arith.maximumf %27, %26 : vector<8x256xf32>
    %29 = vector.broadcast %cst_17 : f32 to vector<8x256xf32>
    %30 = arith.minimumf %29, %28 : vector<8x256xf32>
    %31 = arith.mulf %24, %30 : vector<8x256xf32>
    %cst_18 = arith.constant 0.166666672 : f32
    %32 = vector.broadcast %cst_18 : f32 to vector<8x256xf32>
    %33 = arith.mulf %31, %32 : vector<8x256xf32>
    %c0_19 = arith.constant 0 : index
    %c0_20 = arith.constant 0 : index
    %34 = vector.load %arg7[%c0_19, %c0_20] : memref<8x8xbf16, #tpu.memory_space<vmem>>, vector<8x8xbf16>
    %35 = arith.truncf %33 : vector<8x256xf32> to vector<8x256xbf16>
    %cst_21 = arith.constant dense<0.000000e+00> : vector<8x256xf32>
    %36 = tpu.matmul %34, %35, %cst_21 {dimension_numbers = #tpu.dot_dimension_numbers<[1], [0], [0], [1], [0, 0, 1, 1], [], []>} : vector<8x8xbf16>, vector<8x256xbf16>, vector<8x256xf32> -> vector<8x256xf32>
    %c0_22 = arith.constant 0 : index
    %c0_23 = arith.constant 0 : index
    %37 = vector.load %arg8[%c0_22, %c0_23] : memref<8x1xf32, #tpu.memory_space<vmem>>, vector<8x1xf32>
    %38 = vector.broadcast %37 : vector<8x1xf32> to vector<8x256xf32>
    %39 = arith.addf %36, %38 : vector<8x256xf32>
    %cst_24 = arith.constant 3.000000e+00 : f32
    %40 = vector.broadcast %cst_24 : f32 to vector<8x256xf32>
    %41 = arith.addf %39, %40 : vector<8x256xf32>
    %cst_25 = arith.constant 0.000000e+00 : f32
    %cst_26 = arith.constant 6.000000e+00 : f32
    %42 = vector.broadcast %cst_25 : f32 to vector<8x256xf32>
    %43 = arith.maximumf %42, %41 : vector<8x256xf32>
    %44 = vector.broadcast %cst_26 : f32 to vector<8x256xf32>
    %45 = arith.minimumf %44, %43 : vector<8x256xf32>
    %46 = arith.mulf %39, %45 : vector<8x256xf32>
    %cst_27 = arith.constant 0.166666672 : f32
    %47 = vector.broadcast %cst_27 : f32 to vector<8x256xf32>
    %48 = arith.mulf %46, %47 : vector<8x256xf32>
    %49 = arith.addf %17, %48 : vector<8x256xf32>
    %c0_28 = arith.constant 0 : index
    %c0_29 = arith.constant 0 : index
    %50 = vector.load %arg9[%c0_28, %c0_29] : memref<8x8xbf16, #tpu.memory_space<vmem>>, vector<8x8xbf16>
    %51 = arith.truncf %49 : vector<8x256xf32> to vector<8x256xbf16>
    %cst_30 = arith.constant dense<0.000000e+00> : vector<8x256xf32>
    %52 = tpu.matmul %50, %51, %cst_30 {dimension_numbers = #tpu.dot_dimension_numbers<[1], [0], [0], [1], [0, 0, 1, 1], [], []>} : vector<8x8xbf16>, vector<8x256xbf16>, vector<8x256xf32> -> vector<8x256xf32>
    %c0_31 = arith.constant 0 : index
    %c0_32 = arith.constant 0 : index
    %53 = vector.load %arg10[%c0_31, %c0_32] : memref<8x1xf32, #tpu.memory_space<vmem>>, vector<8x1xf32>
    %54 = vector.broadcast %53 : vector<8x1xf32> to vector<8x256xf32>
    %55 = arith.addf %52, %54 : vector<8x256xf32>
    %cst_33 = arith.constant 1.000000e-01 : f32
    %56 = vector.broadcast %cst_33 : f32 to vector<8x256xf32>
    %57 = arith.mulf %56, %55 : vector<8x256xf32>
    %58 = arith.maximumf %55, %57 : vector<8x256xf32>
    %c0_34 = arith.constant 0 : index
    %c0_35 = arith.constant 0 : index
    %59 = vector.load %arg11[%c0_34, %c0_35] : memref<8x1xf32, #tpu.memory_space<vmem>>, vector<8x1xf32>
    %60 = vector.broadcast %59 : vector<8x1xf32> to vector<8x256xf32>
    %61 = arith.addf %18, %60 : vector<8x256xf32>
    %cst_36 = arith.constant 1.000000e-01 : f32
    %62 = vector.broadcast %cst_36 : f32 to vector<8x256xf32>
    %63 = arith.mulf %62, %61 : vector<8x256xf32>
    %64 = arith.maximumf %61, %63 : vector<8x256xf32>
    %c0_37 = arith.constant 0 : index
    %c0_38 = arith.constant 0 : index
    %65 = vector.load %arg12[%c0_37, %c0_38] : memref<16x8xbf16, #tpu.memory_space<vmem>>, vector<16x8xbf16>
    %66 = arith.truncf %58 : vector<8x256xf32> to vector<8x256xbf16>
    %cst_39 = arith.constant dense<0.000000e+00> : vector<16x256xf32>
    %67 = tpu.matmul %65, %66, %cst_39 {dimension_numbers = #tpu.dot_dimension_numbers<[1], [0], [0], [1], [0, 0, 1, 1], [], []>} : vector<16x8xbf16>, vector<8x256xbf16>, vector<16x256xf32> -> vector<16x256xf32>
    %c0_40 = arith.constant 0 : index
    %c0_41 = arith.constant 0 : index
    %68 = vector.load %arg13[%c0_40, %c0_41] : memref<16x8xbf16, #tpu.memory_space<vmem>>, vector<16x8xbf16>
    %69 = arith.truncf %64 : vector<8x256xf32> to vector<8x256xbf16>
    %cst_42 = arith.constant dense<0.000000e+00> : vector<16x256xf32>
    %70 = tpu.matmul %68, %69, %cst_42 {dimension_numbers = #tpu.dot_dimension_numbers<[1], [0], [0], [1], [0, 0, 1, 1], [], []>} : vector<16x8xbf16>, vector<8x256xbf16>, vector<16x256xf32> -> vector<16x256xf32>
    %71 = arith.addf %67, %70 : vector<16x256xf32>
    %c0_43 = arith.constant 0 : index
    %c0_44 = arith.constant 0 : index
    %72 = vector.load %arg14[%c0_43, %c0_44] : memref<16x1xf32, #tpu.memory_space<vmem>>, vector<16x1xf32>
    %73 = vector.broadcast %72 : vector<16x1xf32> to vector<16x256xf32>
    %74 = arith.addf %71, %73 : vector<16x256xf32>
    %cst_45 = arith.constant 3.000000e+00 : f32
    %75 = vector.broadcast %cst_45 : f32 to vector<16x256xf32>
    %76 = arith.addf %74, %75 : vector<16x256xf32>
    %cst_46 = arith.constant 0.000000e+00 : f32
    %cst_47 = arith.constant 6.000000e+00 : f32
    %77 = vector.broadcast %cst_46 : f32 to vector<16x256xf32>
    %78 = arith.maximumf %77, %76 : vector<16x256xf32>
    %79 = vector.broadcast %cst_47 : f32 to vector<16x256xf32>
    %80 = arith.minimumf %79, %78 : vector<16x256xf32>
    %81 = arith.mulf %74, %80 : vector<16x256xf32>
    %cst_48 = arith.constant 0.166666672 : f32
    %82 = vector.broadcast %cst_48 : f32 to vector<16x256xf32>
    %83 = arith.mulf %81, %82 : vector<16x256xf32>
    %c0_49 = arith.constant 0 : index
    %c0_50 = arith.constant 0 : index
    %c0_51 = arith.constant 0 : index
    %84 = vector.load %arg15[%c0_49, %c0_50, %c0_51] : memref<1x16x256xf32, #tpu.memory_space<vmem>>, vector<1x16x256xf32>
    %85 = vector.shape_cast %84 : vector<1x16x256xf32> to vector<16x256xf32>
    %86 = vector.shape_cast %83 : vector<16x256xf32> to vector<1x16x256xf32>
    tpu.vector_store %arg15[%c0_49, %c0_50, %c0_51], %86 {strides = array<i32>} : memref<1x16x256xf32, #tpu.memory_space<vmem>>, vector<1x16x256xf32>,
    return
  }
  func.func @transform_0(%arg0: i32, %arg1: i32) -> (i32, i32, i32) {
    %c0_i32 = arith.constant 0 : i32
    %c0_i32_0 = arith.constant 0 : i32
    return %arg0, %c0_i32, %arg1 : i32, i32, i32
  }
  func.func @transform_1(%arg0: i32, %arg1: i32) -> (i32, i32) {
    %c0_i32 = arith.constant 0 : i32
    %c0_i32_0 = arith.constant 0 : i32
    %c0_i32_1 = arith.constant 0 : i32
    return %c0_i32, %c0_i32_0 : i32, i32
  }
  func.func @transform_2(%arg0: i32, %arg1: i32) -> (i32, i32) {
    %c0_i32 = arith.constant 0 : i32
    %c0_i32_0 = arith.constant 0 : i32
    %c0_i32_1 = arith.constant 0 : i32
    return %c0_i32, %c0_i32_0 : i32, i32
  }
  func.func @transform_3(%arg0: i32, %arg1: i32) -> (i32, i32) {
    %c0_i32 = arith.constant 0 : i32
    %c0_i32_0 = arith.constant 0 : i32
    %c0_i32_1 = arith.constant 0 : i32
    return %c0_i32, %c0_i32_0 : i32, i32
  }
  func.func @transform_4(%arg0: i32, %arg1: i32) -> (i32, i32) {
    %c0_i32 = arith.constant 0 : i32
    %c0_i32_0 = arith.constant 0 : i32
    %c0_i32_1 = arith.constant 0 : i32
    return %c0_i32, %c0_i32_0 : i32, i32
  }
  func.func @transform_5(%arg0: i32, %arg1: i32) -> (i32, i32) {
    %c0_i32 = arith.constant 0 : i32
    %c0_i32_0 = arith.constant 0 : i32
    %c0_i32_1 = arith.constant 0 : i32
    return %c0_i32, %c0_i32_0 : i32, i32
  }
  func.func @transform_6(%arg0: i32, %arg1: i32) -> (i32, i32) {
    %c0_i32 = arith.constant 0 : i32
    %c0_i32_0 = arith.constant 0 : i32
    %c0_i32_1 = arith.constant 0 : i32
    return %c0_i32, %c0_i32_0 : i32, i32
  }
  func.func @transform_7(%arg0: i32, %arg1: i32) -> (i32, i32) {
    %c0_i32 = arith.constant 0 : i32
    %c0_i32_0 = arith.constant 0 : i32
    %c0_i32_1 = arith.constant 0 : i32
    return %c0_i32, %c0_i32_0 : i32, i32
  }
  func.func @transform_8(%arg0: i32, %arg1: i32) -> (i32, i32) {
    %c0_i32 = arith.constant 0 : i32
    %c0_i32_0 = arith.constant 0 : i32
    %c0_i32_1 = arith.constant 0 : i32
    return %c0_i32, %c0_i32_0 : i32, i32
  }
  func.func @transform_9(%arg0: i32, %arg1: i32) -> (i32, i32) {
    %c0_i32 = arith.constant 0 : i32
    %c0_i32_0 = arith.constant 0 : i32
    %c0_i32_1 = arith.constant 0 : i32
    return %c0_i32, %c0_i32_0 : i32, i32
  }
  func.func @transform_10(%arg0: i32, %arg1: i32) -> (i32, i32) {
    %c0_i32 = arith.constant 0 : i32
    %c0_i32_0 = arith.constant 0 : i32
    %c0_i32_1 = arith.constant 0 : i32
    return %c0_i32, %c0_i32_0 : i32, i32
  }
  func.func @transform_11(%arg0: i32, %arg1: i32) -> (i32, i32) {
    %c0_i32 = arith.constant 0 : i32
    %c0_i32_0 = arith.constant 0 : i32
    %c0_i32_1 = arith.constant 0 : i32
    return %c0_i32, %c0_i32_0 : i32, i32
  }
  func.func @transform_12(%arg0: i32, %arg1: i32) -> (i32, i32) {
    %c0_i32 = arith.constant 0 : i32
    %c0_i32_0 = arith.constant 0 : i32
    %c0_i32_1 = arith.constant 0 : i32
    return %c0_i32, %c0_i32_0 : i32, i32
  }
  func.func @transform_13(%arg0: i32, %arg1: i32) -> (i32, i32, i32) {
    %c0_i32 = arith.constant 0 : i32
    %c0_i32_0 = arith.constant 0 : i32
    return %arg0, %c0_i32, %arg1 : i32, i32, i32
  }
}

</mosaic_0001>

<llo_original>
// kernel: tpu_custom_call.1
$region0: #{tpu_custom_call.1}
  #allocation0 [shape = 'u32[]', space=smem, size = 0x4, offset = 0x4, fixed_abs, tag = 'smem constant byte address 0x4 - core index']
  #allocation1 [shape = 'u32[72,128]{1,0:T(1,128)}', space=vmem, size = 0x9000, scoped, tag = 'internal scratch']
  %s0 = inlined_call_operand.vmem [shape: f32[2,16,256], index: 0, kind: input, shape index: {}]
  %s1 = inlined_call_operand.vmem [shape: bf16[16,16], index: 1, kind: input, shape index: {}]
  %s2 = inlined_call_operand.vmem [shape: f32[8,1], index: 2, kind: input, shape index: {}]
  %s3 = inlined_call_operand.vmem [shape: bf16[8,8], index: 3, kind: input, shape index: {}]
  %s4 = inlined_call_operand.vmem [shape: f32[8,1], index: 4, kind: input, shape index: {}]
  %s5 = inlined_call_operand.vmem [shape: bf16[8,8], index: 5, kind: input, shape index: {}]
  %s6 = inlined_call_operand.vmem [shape: f32[8,1], index: 6, kind: input, shape index: {}]
  %s7 = inlined_call_operand.vmem [shape: bf16[8,8], index: 7, kind: input, shape index: {}]
  %s8 = inlined_call_operand.vmem [shape: f32[8,1], index: 8, kind: input, shape index: {}]
  %s9 = inlined_call_operand.vmem [shape: f32[8,1], index: 9, kind: input, shape index: {}]
  %s10 = inlined_call_operand.vmem [shape: bf16[16,8], index: 10, kind: input, shape index: {}]
  %s11 = inlined_call_operand.vmem [shape: bf16[16,8], index: 11, kind: input, shape index: {}]
  %s12 = inlined_call_operand.vmem [shape: f32[16,1], index: 12, kind: input, shape index: {}]
  %s13 = inlined_call_operand.hbm [shape: f32[2,16,256], index: 13, kind: output, shape index: {}]
  %s14 = sld [smem:[#allocation0]]
  $region85: #{tpu_custom_call.1} parent=0
    _
  %s16 = ssub.s32 1, %s14
  %s17 = scalar_select 0, %s16, %s14
  $region1: #{tpu_custom_call.1} parent=0
    #allocation2 [shape = 'u8[32768]{0}', space=vmem, size = 0x8000, scoped, tag = 'output window, operand 0']
    #allocation3 [shape = 's32[2]{0}', space=sflag, size = 0x8, scoped, tag = 'scoped memory for tpu_custom_call.1']
    %18 = vsyncpa [#allocation3], 0
    %s19 = scalar_lea.sflag [#allocation3], 1
    %20 = vsyncpa %s19, 0
    loop: start=0, step=1, limit=4
    $region2: #{tpu_custom_call.1} parent=1 // loop_pre_header
      _
    $region3: #{tpu_custom_call.1} parent=1 // loop_header
      %s22 = sphi 0, %s26
      %p23 = scmp.ge.s32.totalorder %s22, 4
      %s29 = sphi 0, %s41
      %s30 = sphi 0, %s37
      %s31 = sphi 0, %s29
      %s32 = sphi 0, %s30
      %s33 = sphi 0, %s31
      %s34 = sphi 0, %s32
      %s46 = sphi 0, %s48
      %s49 = sphi 0, %s46
      %s50 = sphi 0, %s49
      %s66 = sphi 0, %s50
      %s70 = sphi 0, %s70
      %s72 = sphi 0, %s70
      %s73 = sphi 0, %s72
      %s87 = sphi 0, %s73
      %s91 = sphi 0, %s91
      %s93 = sphi 0, %s91
      %s94 = sphi 0, %s93
      %s108 = sphi 0, %s94
      %s112 = sphi 0, %s112
      %s114 = sphi 0, %s112
      %s115 = sphi 0, %s114
      %s129 = sphi 0, %s115
      %s133 = sphi 0, %s133
      %s135 = sphi 0, %s133
      %s136 = sphi 0, %s135
      %s150 = sphi 0, %s136
      %s154 = sphi 0, %s154
      %s156 = sphi 0, %s154
      %s157 = sphi 0, %s156
      %s171 = sphi 0, %s157
      %s175 = sphi 0, %s175
      %s177 = sphi 0, %s175
      %s178 = sphi 0, %s177
      %s192 = sphi 0, %s178
      %s196 = sphi 0, %s196
      %s198 = sphi 0, %s196
      %s199 = sphi 0, %s198
      %s213 = sphi 0, %s199
      %s217 = sphi 0, %s217
      %s219 = sphi 0, %s217
      %s220 = sphi 0, %s219
      %s234 = sphi 0, %s220
      %s238 = sphi 0, %s238
      %s240 = sphi 0, %s238
      %s241 = sphi 0, %s240
      %s255 = sphi 0, %s241
      %s259 = sphi 0, %s259
      %s261 = sphi 0, %s259
      %s262 = sphi 0, %s261
      %s276 = sphi 0, %s262
      %s280 = sphi 0, %s280
      %s282 = sphi 0, %s280
      %s283 = sphi 0, %s282
      %s297 = sphi 0, %s283
      %s301 = sphi 0, %s301
      %s303 = sphi 0, %s301
      %s304 = sphi 0, %s303
      %s318 = sphi 0, %s304
      %s326 = sphi 0, %s328
      %s329 = sphi 0, %s326
      %s330 = sphi 0, %s329
      %s346 = sphi 0, %s330
    $region4: #{tpu_custom_call.1} parent=1 // loop_header_branch
      %25 = sbr.rel (%p23) target = $region8
    $region5: #{tpu_custom_call.1} parent=1 // loop_body
      %s27 = ssub.s32 %s22, 1
      %s28 = ssub.s32 %s22, 2
      %s35 = sadd.s32 1, %s30
      %p36 = scmp.ge.s32.totalorder %s35, 1
      %s37 = scalar_select %p36, 0, %s35
      %s38 = sadd.s32 1, %s29
      %s39 = scalar_select %p36, %s38, %s29
      %p40 = scmp.ge.s32.totalorder %s39, 2
      %s41 = scalar_select %p40, 0, %s39
      %s42 = ssub.s32 %s29, %s41
      %s43 = ssub.s32 %s30, %s37
      %s44 = sor.u32 %s42, %s43
      %p45 = scmp.eq.s32.totalorder %s44, 0
      %s47 = sadd.s32 %s46, 1
      %s48 = scalar_select %p45, %s46, %s47
      %p51 = pneg %p45
      %p52 = scmp.eq.s32.totalorder %s22, 1
      %p53 = por %p51, %p52
      %p54 = scmp.ne.s32.totalorder %s46, %s49
      %p55 = scmp.eq.s32.totalorder %s22, 0
      %p56 = por %p54, %p55
      %p57 = scmp.ne.s32.totalorder %s46, %s49
      %p58 = scmp.eq.s32.totalorder %s27, 1
      %p59 = por %p57, %p58
      %p60 = scmp.ne.s32.totalorder %s49, %s50
      %p61 = scmp.eq.s32.totalorder %s27, 0
      %p62 = por %p60, %p61
      %p63 = scmp.ne.s32.totalorder %s49, %s50
      %p64 = scmp.eq.s32.totalorder %s28, 1
      %p65 = por %p63, %p64
      %p67 = scmp.ne.s32.totalorder %s50, %s66
      %p68 = scmp.eq.s32.totalorder %s28, 0
      %p69 = por %p67, %p68
      %s71 = sadd.s32 %s70, 1
      %p74 = scmp.eq.s32.totalorder %s22, 1
      %p75 = scmp.ne.s32.totalorder %s70, %s72
      %p76 = scmp.eq.s32.totalorder %s22, 0
      %p77 = por %p75, %p76
      %p78 = scmp.ne.s32.totalorder %s70, %s72
      %p79 = scmp.eq.s32.totalorder %s27, 1
      %p80 = por %p78, %p79
      %p81 = scmp.ne.s32.totalorder %s72, %s73
      %p82 = scmp.eq.s32.totalorder %s27, 0
      %p83 = por %p81, %p82
      %p84 = scmp.ne.s32.totalorder %s72, %s73
      %p85 = scmp.eq.s32.totalorder %s28, 1
      %p86 = por %p84, %p85
      %p88 = scmp.ne.s32.totalorder %s73, %s87
      %p89 = scmp.eq.s32.totalorder %s28, 0
      %p90 = por %p88, %p89
      %s92 = sadd.s32 %s91, 1
      %p95 = scmp.eq.s32.totalorder %s22, 1
      %p96 = scmp.ne.s32.totalorder %s91, %s93
      %p97 = scmp.eq.s32.totalorder %s22, 0
      %p98 = por %p96, %p97
      %p99 = scmp.ne.s32.totalorder %s91, %s93
      %p100 = scmp.eq.s32.totalorder %s27, 1
      %p101 = por %p99, %p100
      %p102 = scmp.ne.s32.totalorder %s93, %s94
      %p103 = scmp.eq.s32.totalorder %s27, 0
      %p104 = por %p102, %p103
      %p105 = scmp.ne.s32.totalorder %s93, %s94
      %p106 = scmp.eq.s32.totalorder %s28, 1
      %p107 = por %p105, %p106
      %p109 = scmp.ne.s32.totalorder %s94, %s108
      %p110 = scmp.eq.s32.totalorder %s28, 0
      %p111 = por %p109, %p110
      %s113 = sadd.s32 %s112, 1
      %p116 = scmp.eq.s32.totalorder %s22, 1
      %p117 = scmp.ne.s32.totalorder %s112, %s114
      %p118 = scmp.eq.s32.totalorder %s22, 0
      %p119 = por %p117, %p118
      %p120 = scmp.ne.s32.totalorder %s112, %s114
      %p121 = scmp.eq.s32.totalorder %s27, 1
      %p122 = por %p120, %p121
      %p123 = scmp.ne.s32.totalorder %s114, %s115
      %p124 = scmp.eq.s32.totalorder %s27, 0
      %p125 = por %p123, %p124
      %p126 = scmp.ne.s32.totalorder %s114, %s115
      %p127 = scmp.eq.s32.totalorder %s28, 1
      %p128 = por %p126, %p127
      %p130 = scmp.ne.s32.totalorder %s115, %s129
      %p131 = scmp.eq.s32.totalorder %s28, 0
      %p132 = por %p130, %p131
      %s134 = sadd.s32 %s133, 1
      %p137 = scmp.eq.s32.totalorder %s22, 1
      %p138 = scmp.ne.s32.totalorder %s133, %s135
      %p139 = scmp.eq.s32.totalorder %s22, 0
      %p140 = por %p138, %p139
      %p141 = scmp.ne.s32.totalorder %s133, %s135
      %p142 = scmp.eq.s32.totalorder %s27, 1
      %p143 = por %p141, %p142
      %p144 = scmp.ne.s32.totalorder %s135, %s136
      %p145 = scmp.eq.s32.totalorder %s27, 0
      %p146 = por %p144, %p145
      %p147 = scmp.ne.s32.totalorder %s135, %s136
      %p148 = scmp.eq.s32.totalorder %s28, 1
      %p149 = por %p147, %p148
      %p151 = scmp.ne.s32.totalorder %s136, %s150
      %p152 = scmp.eq.s32.totalorder %s28, 0
      %p153 = por %p151, %p152
      %s155 = sadd.s32 %s154, 1
      %p158 = scmp.eq.s32.totalorder %s22, 1
      %p159 = scmp.ne.s32.totalorder %s154, %s156
      %p160 = scmp.eq.s32.totalorder %s22, 0
      %p161 = por %p159, %p160
      %p162 = scmp.ne.s32.totalorder %s154, %s156
      %p163 = scmp.eq.s32.totalorder %s27, 1
      %p164 = por %p162, %p163
      %p165 = scmp.ne.s32.totalorder %s156, %s157
      %p166 = scmp.eq.s32.totalorder %s27, 0
      %p167 = por %p165, %p166
      %p168 = scmp.ne.s32.totalorder %s156, %s157
      %p169 = scmp.eq.s32.totalorder %s28, 1
      %p170 = por %p168, %p169
      %p172 = scmp.ne.s32.totalorder %s157, %s171
      %p173 = scmp.eq.s32.totalorder %s28, 0
      %p174 = por %p172, %p173
      %s176 = sadd.s32 %s175, 1
      %p179 = scmp.eq.s32.totalorder %s22, 1
      %p180 = scmp.ne.s32.totalorder %s175, %s177
      %p181 = scmp.eq.s32.totalorder %s22, 0
      %p182 = por %p180, %p181
      %p183 = scmp.ne.s32.totalorder %s175, %s177
      %p184 = scmp.eq.s32.totalorder %s27, 1
      %p185 = por %p183, %p184
      %p186 = scmp.ne.s32.totalorder %s177, %s178
      %p187 = scmp.eq.s32.totalorder %s27, 0
      %p188 = por %p186, %p187
      %p189 = scmp.ne.s32.totalorder %s177, %s178
      %p190 = scmp.eq.s32.totalorder %s28, 1
      %p191 = por %p189, %p190
      %p193 = scmp.ne.s32.totalorder %s178, %s192
      %p194 = scmp.eq.s32.totalorder %s28, 0
      %p195 = por %p193, %p194
      %s197 = sadd.s32 %s196, 1
      %p200 = scmp.eq.s32.totalorder %s22, 1
      %p201 = scmp.ne.s32.totalorder %s196, %s198
      %p202 = scmp.eq.s32.totalorder %s22, 0
      %p203 = por %p201, %p202
      %p204 = scmp.ne.s32.totalorder %s196, %s198
      %p205 = scmp.eq.s32.totalorder %s27, 1
      %p206 = por %p204, %p205
      %p207 = scmp.ne.s32.totalorder %s198, %s199
      %p208 = scmp.eq.s32.totalorder %s27, 0
      %p209 = por %p207, %p208
      %p210 = scmp.ne.s32.totalorder %s198, %s199
      %p211 = scmp.eq.s32.totalorder %s28, 1
      %p212 = por %p210, %p211
      %p214 = scmp.ne.s32.totalorder %s199, %s213
      %p215 = scmp.eq.s32.totalorder %s28, 0
      %p216 = por %p214, %p215
      %s218 = sadd.s32 %s217, 1
      %p221 = scmp.eq.s32.totalorder %s22, 1
      %p222 = scmp.ne.s32.totalorder %s217, %s219
      %p223 = scmp.eq.s32.totalorder %s22, 0
      %p224 = por %p222, %p223
      %p225 = scmp.ne.s32.totalorder %s217, %s219
      %p226 = scmp.eq.s32.totalorder %s27, 1
      %p227 = por %p225, %p226
      %p228 = scmp.ne.s32.totalorder %s219, %s220
      %p229 = scmp.eq.s32.totalorder %s27, 0
      %p230 = por %p228, %p229
      %p231 = scmp.ne.s32.totalorder %s219, %s220
      %p232 = scmp.eq.s32.totalorder %s28, 1
      %p233 = por %p231, %p232
      %p235 = scmp.ne.s32.totalorder %s220, %s234
      %p236 = scmp.eq.s32.totalorder %s28, 0
      %p237 = por %p235, %p236
      %s239 = sadd.s32 %s238, 1
      %p242 = scmp.eq.s32.totalorder %s22, 1
      %p243 = scmp.ne.s32.totalorder %s238, %s240
      %p244 = scmp.eq.s32.totalorder %s22, 0
      %p245 = por %p243, %p244
      %p246 = scmp.ne.s32.totalorder %s238, %s240
      %p247 = scmp.eq.s32.totalorder %s27, 1
      %p248 = por %p246, %p247
      %p249 = scmp.ne.s32.totalorder %s240, %s241
      %p250 = scmp.eq.s32.totalorder %s27, 0
      %p251 = por %p249, %p250
      %p252 = scmp.ne.s32.totalorder %s240, %s241
      %p253 = scmp.eq.s32.totalorder %s28, 1
      %p254 = por %p252, %p253
      %p256 = scmp.ne.s32.totalorder %s241, %s255
      %p257 = scmp.eq.s32.totalorder %s28, 0
      %p258 = por %p256, %p257
      %s260 = sadd.s32 %s259, 1
      %p263 = scmp.eq.s32.totalorder %s22, 1
      %p264 = scmp.ne.s32.totalorder %s259, %s261
      %p265 = scmp.eq.s32.totalorder %s22, 0
      %p266 = por %p264, %p265
      %p267 = scmp.ne.s32.totalorder %s259, %s261
      %p268 = scmp.eq.s32.totalorder %s27, 1
      %p269 = por %p267, %p268
      %p270 = scmp.ne.s32.totalorder %s261, %s262
      %p271 = scmp.eq.s32.totalorder %s27, 0
      %p272 = por %p270, %p271
      %p273 = scmp.ne.s32.totalorder %s261, %s262
      %p274 = scmp.eq.s32.totalorder %s28, 1
      %p275 = por %p273, %p274
      %p277 = scmp.ne.s32.totalorder %s262, %s276
      %p278 = scmp.eq.s32.totalorder %s28, 0
      %p279 = por %p277, %p278
      %s281 = sadd.s32 %s280, 1
      %p284 = scmp.eq.s32.totalorder %s22, 1
      %p285 = scmp.ne.s32.totalorder %s280, %s282
      %p286 = scmp.eq.s32.totalorder %s22, 0
      %p287 = por %p285, %p286
      %p288 = scmp.ne.s32.totalorder %s280, %s282
      %p289 = scmp.eq.s32.totalorder %s27, 1
      %p290 = por %p288, %p289
      %p291 = scmp.ne.s32.totalorder %s282, %s283
      %p292 = scmp.eq.s32.totalorder %s27, 0
      %p293 = por %p291, %p292
      %p294 = scmp.ne.s32.totalorder %s282, %s283
      %p295 = scmp.eq.s32.totalorder %s28, 1
      %p296 = por %p294, %p295
      %p298 = scmp.ne.s32.totalorder %s283, %s297
      %p299 = scmp.eq.s32.totalorder %s28, 0
      %p300 = por %p298, %p299
      %s302 = sadd.s32 %s301, 1
      %p305 = scmp.eq.s32.totalorder %s22, 1
      %p306 = scmp.ne.s32.totalorder %s301, %s303
      %p307 = scmp.eq.s32.totalorder %s22, 0
      %p308 = por %p306, %p307
      %p309 = scmp.ne.s32.totalorder %s301, %s303
      %p310 = scmp.eq.s32.totalorder %s27, 1
      %p311 = por %p309, %p310
      %p312 = scmp.ne.s32.totalorder %s303, %s304
      %p313 = scmp.eq.s32.totalorder %s27, 0
      %p314 = por %p312, %p313
      %p315 = scmp.ne.s32.totalorder %s303, %s304
      %p316 = scmp.eq.s32.totalorder %s28, 1
      %p317 = por %p315, %p316
      %p319 = scmp.ne.s32.totalorder %s304, %s318
      %p320 = scmp.eq.s32.totalorder %s28, 0
      %p321 = por %p319, %p320
      %s322 = ssub.s32 %s29, %s41
      %s323 = ssub.s32 %s30, %s37
      %s324 = sor.u32 %s322, %s323
      %p325 = scmp.eq.s32.totalorder %s324, 0
      %s327 = sadd.s32 %s326, 1
      %s328 = scalar_select %p325, %s326, %s327
      %p331 = pneg %p325
      %p332 = scmp.eq.s32.totalorder %s22, 1
      %p333 = por %p331, %p332
      %p334 = scmp.ne.s32.totalorder %s326, %s329
      %p335 = scmp.eq.s32.totalorder %s22, 0
      %p336 = por %p334, %p335
      %p337 = scmp.ne.s32.totalorder %s326, %s329
      %p338 = scmp.eq.s32.totalorder %s27, 1
      %p339 = por %p337, %p338
      %p340 = scmp.ne.s32.totalorder %s329, %s330
      %p341 = scmp.eq.s32.totalorder %s27, 0
      %p342 = por %p340, %p341
      %p343 = scmp.ne.s32.totalorder %s329, %s330
      %p344 = scmp.eq.s32.totalorder %s28, 1
      %p345 = por %p343, %p344
      %p347 = scmp.ne.s32.totalorder %s330, %s346
      %p348 = scmp.eq.s32.totalorder %s28, 0
      %p349 = por %p347, %p348
      %p350 = scmp.le.s32.totalorder 1, %s22
      %p351 = scmp.lt.s32.totalorder %s22, 3
      %p352 = pnand %p350, %p351
      %p353 = pneg %p352
      // Predicated region
      $region9: #{tpu_custom_call.1} parent=5 // pred_check
        _
      $region10: #{tpu_custom_call.1} parent=5 // pred_check_branch
        %355 = sbr.rel (%p352) target = $region12
      $region11: #{tpu_custom_call.1} parent=5 // pred_region
        %s356 = ssub.s32 %s22, 1
        // Predicated region
        $region13: #{tpu_custom_call.1} parent=11 // pred_check
          %p357 = pneg %p83
        $region14: #{tpu_custom_call.1} parent=11 // pred_check_branch
          %359 = sbr.rel (%p357) target = $region16
        $region15: #{tpu_custom_call.1} parent=11 // pred_region
          _
        $region16: #{tpu_custom_call.1} parent=11 // pred_fallthru
          _
        // Predicated region
        $region17: #{tpu_custom_call.1} parent=11 // pred_check
          %p360 = pneg %p104
        $region18: #{tpu_custom_call.1} parent=11 // pred_check_branch
          %362 = sbr.rel (%p360) target = $region20
        $region19: #{tpu_custom_call.1} parent=11 // pred_region
          _
        $region20: #{tpu_custom_call.1} parent=11 // pred_fallthru
          _
        // Predicated region
        $region21: #{tpu_custom_call.1} parent=11 // pred_check
          %p363 = pneg %p125
        $region22: #{tpu_custom_call.1} parent=11 // pred_check_branch
          %365 = sbr.rel (%p363) target = $region24
        $region23: #{tpu_custom_call.1} parent=11 // pred_region
          _
        $region24: #{tpu_custom_call.1} parent=11 // pred_fallthru
          _
        // Predicated region
        $region25: #{tpu_custom_call.1} parent=11 // pred_check
          %p366 = pneg %p146
        $region26: #{tpu_custom_call.1} parent=11 // pred_check_branch
          %368 = sbr.rel (%p366) target = $region28
        $region27: #{tpu_custom_call.1} parent=11 // pred_region
          _
        $region28: #{tpu_custom_call.1} parent=11 // pred_fallthru
          _
        // Predicated region
        $region29: #{tpu_custom_call.1} parent=11 // pred_check
          %p369 = pneg %p167
        $region30: #{tpu_custom_call.1} parent=11 // pred_check_branch
          %371 = sbr.rel (%p369) target = $region32
        $region31: #{tpu_custom_call.1} parent=11 // pred_region
          _
        $region32: #{tpu_custom_call.1} parent=11 // pred_fallthru
          _
        // Predicated region
        $region33: #{tpu_custom_call.1} parent=11 // pred_check
          %p372 = pneg %p188
        $region34: #{tpu_custom_call.1} parent=11 // pred_check_branch
          %374 = sbr.rel (%p372) target = $region36
        $region35: #{tpu_custom_call.1} parent=11 // pred_region
          _
        $region36: #{tpu_custom_call.1} parent=11 // pred_fallthru
          _
        // Predicated region
        $region37: #{tpu_custom_call.1} parent=11 // pred_check
          %p375 = pneg %p209
        $region38: #{tpu_custom_call.1} parent=11 // pred_check_branch
          %377 = sbr.rel (%p375) target = $region40
        $region39: #{tpu_custom_call.1} parent=11 // pred_region
          _
        $region40: #{tpu_custom_call.1} parent=11 // pred_fallthru
          _
        // Predicated region
        $region41: #{tpu_custom_call.1} parent=11 // pred_check
          %p378 = pneg %p230
        $region42: #{tpu_custom_call.1} parent=11 // pred_check_branch
          %380 = sbr.rel (%p378) target = $region44
        $region43: #{tpu_custom_call.1} parent=11 // pred_region
          _
        $region44: #{tpu_custom_call.1} parent=11 // pred_fallthru
          _
        // Predicated region
        $region45: #{tpu_custom_call.1} parent=11 // pred_check
          %p381 = pneg %p251
        $region46: #{tpu_custom_call.1} parent=11 // pred_check_branch
          %383 = sbr.rel (%p381) target = $region48
        $region47: #{tpu_custom_call.1} parent=11 // pred_region
          _
        $region48: #{tpu_custom_call.1} parent=11 // pred_fallthru
          _
        // Predicated region
        $region49: #{tpu_custom_call.1} parent=11 // pred_check
          %p384 = pneg %p272
        $region50: #{tpu_custom_call.1} parent=11 // pred_check_branch
          %386 = sbr.rel (%p384) target = $region52
        $region51: #{tpu_custom_call.1} parent=11 // pred_region
          _
        $region52: #{tpu_custom_call.1} parent=11 // pred_fallthru
          _
        // Predicated region
        $region53: #{tpu_custom_call.1} parent=11 // pred_check
          %p387 = pneg %p293
        $region54: #{tpu_custom_call.1} parent=11 // pred_check_branch
          %389 = sbr.rel (%p387) target = $region56
        $region55: #{tpu_custom_call.1} parent=11 // pred_region
          _
        $region56: #{tpu_custom_call.1} parent=11 // pred_fallthru
          _
        // Predicated region
        $region57: #{tpu_custom_call.1} parent=11 // pred_check
          %p390 = pneg %p314
        $region58: #{tpu_custom_call.1} parent=11 // pred_check_branch
          %392 = sbr.rel (%p390) target = $region60
        $region59: #{tpu_custom_call.1} parent=11 // pred_region
          _
        $region60: #{tpu_custom_call.1} parent=11 // pred_fallthru
          _
      $region12: #{tpu_custom_call.1} parent=5 // pred_fallthru
        _
      %p393 = scmp.lt.s32.totalorder %s22, 2
      // Predicated region
      $region61: #{tpu_custom_call.1} parent=5 // pred_check
        %p394 = pneg %p393
      $region62: #{tpu_custom_call.1} parent=5 // pred_check_branch
        %396 = sbr.rel (%p394) target = $region64
      $region63: #{tpu_custom_call.1} parent=5 // pred_region
        // Predicated region
        $region65: #{tpu_custom_call.1} parent=63 // pred_check
          %p397 = pneg %p56
        $region66: #{tpu_custom_call.1} parent=63 // pred_check_branch
          %399 = sbr.rel (%p397) target = $region68
        $region67: #{tpu_custom_call.1} parent=63 // pred_region
          %s400 = smul.u32 2, %s30
          %p401 = scmp.lt.s32.totalorder %s29, 1
          %s402 = scalar_select %p401, %s29, 1
          %p403 = scmp.lt.s32.totalorder %s400, 1
          %s404 = scalar_select %p403, %s400, 1
          %s405 = smul.addr %s402, 4
          %s406 = sadd.s32 %s404, %s405
          %s407 = smul.addr %s406, 8
          %s408 = scalar_lea.vmem %s0, %s407
          %s409 = smul.u32 2, %s30
        $region68: #{tpu_custom_call.1} parent=63 // pred_fallthru
          _
      $region64: #{tpu_custom_call.1} parent=5 // pred_fallthru
        _
      %p410 = scmp.le.s32.totalorder 1, %s22
      %p411 = scmp.lt.s32.totalorder %s22, 3
      %p412 = pnand %p410, %p411
      %p413 = pneg %p412
      // Predicated region
      $region69: #{tpu_custom_call.1} parent=5 // pred_check
        _
      $region70: #{tpu_custom_call.1} parent=5 // pred_check_branch
        %415 = sbr.rel (%p412) target = $region72
      $region71: #{tpu_custom_call.1} parent=5 // pred_region
        %s416 = ssub.s32 %s22, 1
        %s417 = smul.u32 2, %s32
        %p418 = scmp.lt.s32.totalorder %s31, 1
        %s419 = scalar_select %p418, %s31, 1
        %p420 = scmp.lt.s32.totalorder %s417, 1
        %s421 = scalar_select %p420, %s417, 1
        %s422 = smul.addr %s419, 4
        %s423 = sadd.s32 %s421, %s422
        %s424 = smul.addr %s423, 8
        %s425 = scalar_lea.vmem %s0, %s424
        %p426 = pneg %p62
        %p427 = pneg %p59
        %p428 = pneg %p83
        %p429 = pneg %p80
        %p430 = pneg %p104
        %p431 = pneg %p101
        %p432 = pneg %p125
        %p433 = pneg %p122
        %p434 = pneg %p146
        %p435 = pneg %p143
        %p436 = pneg %p167
        %p437 = pneg %p164
        %p438 = pneg %p188
        %p439 = pneg %p185
        %p440 = pneg %p209
        %p441 = pneg %p206
        %p442 = pneg %p230
        %p443 = pneg %p227
        %p444 = pneg %p251
        %p445 = pneg %p248
        %p446 = pneg %p272
        %p447 = pneg %p269
        %p448 = pneg %p293
        %p449 = pneg %p290
        %p450 = pneg %p314
        %p451 = pneg %p311
        %p452 = pneg %p342
        %p453 = pneg %p339
        %s454 = sand.u32 %s329, 1
        %s455 = scalar_lea.sflag [#allocation3], %s454
        %s456 = sand.u32 %s329, 1
        %s457 = smul.addr %s456, 32
        %s458 = scalar_lea.vmem [#allocation2], %s457
        %s459 = smul.u32 2, %s32
        %p460 = scmp.lt.s32.totalorder %s31, 1
        %s461 = scalar_select %p460, %s31, 1
        %p462 = scmp.lt.s32.totalorder %s459, 1
        %s463 = scalar_select %p462, %s459, 1
        %s464 = smul.addr %s461, 4
        %s465 = sadd.s32 %s463, %s464
        %s466 = smul.addr %s465, 8
        %s467 = scalar_lea.vmem %s0, %s466
        %s468 = smul.u32 2, %s32
        %s469 = smul.u32 2, %s32
        %v471 = vld [vmem:[%s467] sm:$0xff]
        %v472 = vld [vmem:[%s467 + $0x8] sm:$0xff]
        %v473 = vld [vmem:[%s467 + $0x10] sm:$0xff]
        %v474 = vld [vmem:[%s467 + $0x18] sm:$0xff]
        %v475 = vpack.c.bf16 %v473, %v471
        %v476 = vpack.c.bf16 %v474, %v472
        %v477 = vld [vmem:[%s1] sm:$0xf]
        %v478 = vld [vmem:[%s1 + $0x4] sm:$0xf]
        %v481 = vunpack.c.l.b16 %v477
        %v482 = vunpack.c.l.b16 %v478
        %v483 = vpack.c.b16 %v482, %v481
        %vm484 = vcmask 130048
        %v486 = vsel %vm484, %v483, 0
        %488 = vmatpush.bf16.msra.mxu0 0
        %489 = vmatpush.bf16.msra.mxu0 0
        %490 = vmatpush.bf16.msra.mxu0 0
        %491 = vmatpush.bf16.msra.mxu0 0
        %492 = vmatpush.bf16.msra.mxu0 0
        %493 = vmatpush.bf16.msra.mxu0 0
        %494 = vmatpush.bf16.msra.mxu0 0
        %495 = vmatpush.bf16.msra.mxu0 %v475
        %496 = vmatmul.bf16.gmra.mxu0 %v486
        %v497 = vpop.f32.mrf.mxu0
        %v498 = vadd.f32 0.0, %v497
        %v499 = vpop.f32.mrf.mxu0
        %v500 = vadd.f32 0.0, %v499
        %501 = vdwg.mxu0
        %502 = vmatpush.bf16.msra.mxu0 0
        %503 = vmatpush.bf16.msra.mxu0 0
        %504 = vmatpush.bf16.msra.mxu0 0
        %505 = vmatpush.bf16.msra.mxu0 0
        %506 = vmatpush.bf16.msra.mxu0 0
        %507 = vmatpush.bf16.msra.mxu0 0
        %508 = vmatpush.bf16.msra.mxu0 0
        %509 = vmatpush.bf16.msra.mxu0 %v476
        %510 = vmatmul.bf16.gmra.mxu0 %v486
        %v511 = vpop.f32.mrf.mxu0
        %v512 = vadd.f32 0.0, %v511
        %v513 = vpop.f32.mrf.mxu0
        %v514 = vadd.f32 0.0, %v513
        %515 = vdwg.mxu0
        %v516 = vld [vmem:[%s2] sm:$0xff]
        %518 = vset.pattern.permute.xlu0 0
        %519 = vperm.xlu0 %518, %v516
        %v520 = vpop.permute.xlu0 %519
        %v522 = vadd.f32 %v498, %v520
        %v523 = vadd.f32 %v512, %v520
        %v524 = vadd.f32 %v522, 3.0
        %v525 = vadd.f32 %v523, 3.0
        %v526 = vmax.f32 %v524, 0.0
        %v527 = vmax.f32 %v525, 0.0
        %v528 = vmin.f32 %v526, 6.0
        %v529 = vmin.f32 %v527, 6.0
        %v530 = vmul.f32 %v522, %v528
        %v531 = vmul.f32 %v523, %v529
        %v532 = vmul.f32 %v530, 0.16666667
        %v533 = vmul.f32 %v531, 0.16666667
        %v534 = vld [vmem:[%s3] sm:$0xf]
        %v535 = vpack.c.bf16 %v532, %v532
        %v536 = vpack.c.bf16 %v533, %v533
        %v537 = vld [vmem:[%s4] sm:$0xff]
        %539 = vset.pattern.permute.xlu0 0
        %540 = vperm.xlu0 %539, %v537
        %v541 = vpop.permute.xlu0 %540
        %vm543 = vcmask 64512
        %v545 = vsel %vm543, %v534, 0
        %vm547 = vcmask 1043456
        %v549 = vsel %vm547, %v535, 0
        %v552 = vsel %vm547, %v536, 0
        %554 = vmatpush.bf16.msra.mxu0 0
        %555 = vmatpush.bf16.msra.mxu0 0
        %556 = vmatpush.bf16.msra.mxu0 0
        %557 = vmatpush.bf16.msra.mxu0 0
        %558 = vmatpush.bf16.msra.mxu0 0
        %559 = vmatpush.bf16.msra.mxu0 0
        %560 = vmatpush.bf16.msra.mxu0 0
        %561 = vmatpush.bf16.msra.mxu0 %v549
        %562 = vmatmul.bf16.gmra.mxu0 %v545
        %v563 = vpop.f32.mrf.mxu0
        %v564 = vadd.f32 %v541, %v563
        %v565 = vpop.f32.mrf.mxu0
        %566 = vdwg.mxu0
        %567 = vmatpush.bf16.msra.mxu0 0
        %568 = vmatpush.bf16.msra.mxu0 0
        %569 = vmatpush.bf16.msra.mxu0 0
        %570 = vmatpush.bf16.msra.mxu0 0
        %571 = vmatpush.bf16.msra.mxu0 0
        %572 = vmatpush.bf16.msra.mxu0 0
        %573 = vmatpush.bf16.msra.mxu0 0
        %574 = vmatpush.bf16.msra.mxu0 %v552
        %575 = vmatmul.bf16.gmra.mxu0 %v545
        %v576 = vpop.f32.mrf.mxu0
        %v577 = vadd.f32 %v541, %v576
        %v578 = vpop.f32.mrf.mxu0
        %579 = vdwg.mxu0
        %v580 = vadd.f32 %v564, 3.0
        %v581 = vadd.f32 %v577, 3.0
        %v582 = vmax.f32 %v580, 0.0
        %v583 = vmax.f32 %v581, 0.0
        %v584 = vmin.f32 %v582, 6.0
        %v585 = vmin.f32 %v583, 6.0
        %v586 = vmul.f32 %v564, %v584
        %v587 = vmul.f32 %v577, %v585
        %v588 = vmul.f32 %v586, 0.16666667
        %v589 = vmul.f32 %v587, 0.16666667
        %v590 = vld [vmem:[%s5] sm:$0xf]
        %v591 = vpack.c.bf16 %v588, %v588
        %v592 = vpack.c.bf16 %v589, %v589
        %v593 = vld [vmem:[%s6] sm:$0xff]
        %595 = vset.pattern.permute.xlu0 0
        %596 = vperm.xlu0 %595, %v593
        %v597 = vpop.permute.xlu0 %596
        %v600 = vsel %vm543, %v590, 0
        %v603 = vsel %vm547, %v591, 0
        %v606 = vsel %vm547, %v592, 0
        %608 = vmatpush.bf16.msra.mxu0 0
        %609 = vmatpush.bf16.msra.mxu0 0
        %610 = vmatpush.bf16.msra.mxu0 0
        %611 = vmatpush.bf16.msra.mxu0 0
        %612 = vmatpush.bf16.msra.mxu0 0
        %613 = vmatpush.bf16.msra.mxu0 0
        %614 = vmatpush.bf16.msra.mxu0 0
        %615 = vmatpush.bf16.msra.mxu0 %v603
        %616 = vmatmul.bf16.gmra.mxu0 %v600
        %v617 = vpop.f32.mrf.mxu0
        %v618 = vadd.f32 %v597, %v617
        %v619 = vpop.f32.mrf.mxu0
        %620 = vdwg.mxu0
        %621 = vmatpush.bf16.msra.mxu0 0
        %622 = vmatpush.bf16.msra.mxu0 0
        %623 = vmatpush.bf16.msra.mxu0 0
        %624 = vmatpush.bf16.msra.mxu0 0
        %625 = vmatpush.bf16.msra.mxu0 0
        %626 = vmatpush.bf16.msra.mxu0 0
        %627 = vmatpush.bf16.msra.mxu0 0
        %628 = vmatpush.bf16.msra.mxu0 %v606
        %629 = vmatmul.bf16.gmra.mxu0 %v600
        %v630 = vpop.f32.mrf.mxu0
        %v631 = vadd.f32 %v597, %v630
        %v632 = vpop.f32.mrf.mxu0
        %633 = vdwg.mxu0
        %v634 = vadd.f32 %v618, 3.0
        %v635 = vadd.f32 %v631, 3.0
        %v636 = vmax.f32 %v634, 0.0
        %v637 = vmax.f32 %v635, 0.0
        %v638 = vmin.f32 %v636, 6.0
        %v639 = vmin.f32 %v637, 6.0
        %v640 = vmul.f32 %v618, %v638
        %v641 = vmul.f32 %v631, %v639
        %v642 = vmul.f32 %v640, 0.16666667
        %v643 = vmul.f32 %v641, 0.16666667
        %v644 = vadd.f32 %v532, %v642
        %v645 = vadd.f32 %v533, %v643
        %v646 = vld [vmem:[%s7] sm:$0xf]
        %v647 = vpack.c.bf16 %v644, %v644
        %v648 = vpack.c.bf16 %v645, %v645
        %v649 = vld [vmem:[%s8] sm:$0xff]
        %651 = vset.pattern.permute.xlu0 0
        %652 = vperm.xlu0 %651, %v649
        %v653 = vpop.permute.xlu0 %652
        %v656 = vsel %vm543, %v646, 0
        %v659 = vsel %vm547, %v647, 0
        %v662 = vsel %vm547, %v648, 0
        %664 = vmatpush.bf16.msra.mxu0 0
        %665 = vmatpush.bf16.msra.mxu0 0
        %666 = vmatpush.bf16.msra.mxu0 0
        %667 = vmatpush.bf16.msra.mxu0 0
        %668 = vmatpush.bf16.msra.mxu0 0
        %669 = vmatpush.bf16.msra.mxu0 0
        %670 = vmatpush.bf16.msra.mxu0 0
        %671 = vmatpush.bf16.msra.mxu0 %v659
        %672 = vmatmul.bf16.gmra.mxu0 %v656
        %v673 = vpop.f32.mrf.mxu0
        %v674 = vadd.f32 %v653, %v673
        %v675 = vpop.f32.mrf.mxu0
        %676 = vdwg.mxu0
        %677 = vmatpush.bf16.msra.mxu0 0
        %678 = vmatpush.bf16.msra.mxu0 0
        %679 = vmatpush.bf16.msra.mxu0 0
        %680 = vmatpush.bf16.msra.mxu0 0
        %681 = vmatpush.bf16.msra.mxu0 0
        %682 = vmatpush.bf16.msra.mxu0 0
        %683 = vmatpush.bf16.msra.mxu0 0
        %684 = vmatpush.bf16.msra.mxu0 %v662
        %685 = vmatmul.bf16.gmra.mxu0 %v656
        %v686 = vpop.f32.mrf.mxu0
        %v687 = vadd.f32 %v653, %v686
        %v688 = vpop.f32.mrf.mxu0
        %689 = vdwg.mxu0
        %v690 = vmul.f32 %v674, 0.1
        %v691 = vmul.f32 %v687, 0.1
        %v692 = vmax.f32 %v674, %v690
        %v693 = vmax.f32 %v687, %v691
        %v694 = vld [vmem:[%s9] sm:$0xff]
        %696 = vset.pattern.permute.xlu0 0
        %697 = vperm.xlu0 %696, %v694
        %v698 = vpop.permute.xlu0 %697
        %v700 = vadd.f32 %v500, %v698
        %v701 = vadd.f32 %v514, %v698
        %v702 = vmul.f32 %v700, 0.1
        %v703 = vmul.f32 %v701, 0.1
        %v704 = vmax.f32 %v700, %v702
        %v705 = vmax.f32 %v701, %v703
        %v706 = vld [vmem:[%s10] sm:$0xf]
        %v707 = vld [vmem:[%s10 + $0x4] sm:$0xf]
        %v708 = vpack.c.bf16 %v692, %v692
        %v709 = vpack.c.bf16 %v693, %v693
        %v710 = vld [vmem:[%s11] sm:$0xf]
        %v711 = vld [vmem:[%s11 + $0x4] sm:$0xf]
        %v712 = vpack.c.bf16 %v704, %v704
        %v713 = vpack.c.bf16 %v705, %v705
        %v716 = vunpack.c.l.b16 %v710
        %v717 = vunpack.c.l.b16 %v711
        %v718 = vpack.c.b16 %v717, %v716
        %v720 = vsel %vm543, %v718, 0
        %v723 = vsel %vm547, %v712, 0
        %v726 = vsel %vm547, %v713, 0
        %728 = vmatpush.bf16.msra.mxu0 0
        %729 = vmatpush.bf16.msra.mxu0 0
        %730 = vmatpush.bf16.msra.mxu0 0
        %731 = vmatpush.bf16.msra.mxu0 0
        %732 = vmatpush.bf16.msra.mxu0 0
        %733 = vmatpush.bf16.msra.mxu0 0
        %734 = vmatpush.bf16.msra.mxu0 0
        %735 = vmatpush.bf16.msra.mxu0 %v723
        %736 = vmatmul.bf16.gmra.mxu0 %v720
        %v737 = vpop.f32.mrf.mxu0
        %v738 = vadd.f32 0.0, %v737
        %v739 = vpop.f32.mrf.mxu0
        %v740 = vadd.f32 0.0, %v739
        %741 = vdwg.mxu0
        %742 = vmatpush.bf16.msra.mxu0 0
        %743 = vmatpush.bf16.msra.mxu0 0
        %744 = vmatpush.bf16.msra.mxu0 0
        %745 = vmatpush.bf16.msra.mxu0 0
        %746 = vmatpush.bf16.msra.mxu0 0
        %747 = vmatpush.bf16.msra.mxu0 0
        %748 = vmatpush.bf16.msra.mxu0 0
        %749 = vmatpush.bf16.msra.mxu0 %v726
        %750 = vmatmul.bf16.gmra.mxu0 %v720
        %v751 = vpop.f32.mrf.mxu0
        %v752 = vadd.f32 0.0, %v751
        %v753 = vpop.f32.mrf.mxu0
        %v754 = vadd.f32 0.0, %v753
        %755 = vdwg.mxu0
        %v758 = vunpack.c.l.b16 %v706
        %v759 = vunpack.c.l.b16 %v707
        %v760 = vpack.c.b16 %v759, %v758
        %v762 = vsel %vm543, %v760, 0
        %v765 = vsel %vm547, %v708, 0
        %v768 = vsel %vm547, %v709, 0
        %770 = vmatpush.bf16.msra.mxu0 0
        %771 = vmatpush.bf16.msra.mxu0 0
        %772 = vmatpush.bf16.msra.mxu0 0
        %773 = vmatpush.bf16.msra.mxu0 0
        %774 = vmatpush.bf16.msra.mxu0 0
        %775 = vmatpush.bf16.msra.mxu0 0
        %776 = vmatpush.bf16.msra.mxu0 0
        %777 = vmatpush.bf16.msra.mxu0 %v765
        %778 = vmatmul.bf16.gmra.mxu0 %v762
        %v779 = vpop.f32.mrf.mxu0
        %v780 = vadd.f32 %v738, %v779
        %v781 = vpop.f32.mrf.mxu0
        %v782 = vadd.f32 %v740, %v781
        %783 = vdwg.mxu0
        %784 = vmatpush.bf16.msra.mxu0 0
        %785 = vmatpush.bf16.msra.mxu0 0
        %786 = vmatpush.bf16.msra.mxu0 0
        %787 = vmatpush.bf16.msra.mxu0 0
        %788 = vmatpush.bf16.msra.mxu0 0
        %789 = vmatpush.bf16.msra.mxu0 0
        %790 = vmatpush.bf16.msra.mxu0 0
        %791 = vmatpush.bf16.msra.mxu0 %v768
        %792 = vmatmul.bf16.gmra.mxu0 %v762
        %v793 = vpop.f32.mrf.mxu0
        %v794 = vadd.f32 %v752, %v793
        %v795 = vpop.f32.mrf.mxu0
        %v796 = vadd.f32 %v754, %v795
        %797 = vdwg.mxu0
        %v798 = vld [vmem:[%s12] sm:$0xff]
        %v799 = vld [vmem:[%s12 + $0x8] sm:$0xff]
        %801 = vset.pattern.permute.xlu0 0
        %802 = vperm.xlu0 %801, %v798
        %v803 = vpop.permute.xlu0 %802
        %806 = vset.pattern.permute.xlu0 0
        %807 = vperm.xlu0 %806, %v799
        %v808 = vpop.permute.xlu0 %807
        %v810 = vadd.f32 %v780, %v803
        %v811 = vadd.f32 %v794, %v803
        %v812 = vadd.f32 %v782, %v808
        %v813 = vadd.f32 %v796, %v808
        %v814 = vadd.f32 %v810, 3.0
        %v815 = vadd.f32 %v811, 3.0
        %v816 = vadd.f32 %v812, 3.0
        %v817 = vadd.f32 %v813, 3.0
        %v818 = vmax.f32 %v814, 0.0
        %v819 = vmax.f32 %v815, 0.0
        %v820 = vmax.f32 %v816, 0.0
        %v821 = vmax.f32 %v817, 0.0
        %v822 = vmin.f32 %v818, 6.0
        %v823 = vmin.f32 %v819, 6.0
        %v824 = vmin.f32 %v820, 6.0
        %v825 = vmin.f32 %v821, 6.0
        %v826 = vmul.f32 %v810, %v822
        %v827 = vmul.f32 %v811, %v823
        %v828 = vmul.f32 %v812, %v824
        %v829 = vmul.f32 %v813, %v825
        %v830 = vmul.f32 %v826, 0.16666667
        %v831 = vmul.f32 %v827, 0.16666667
        %v832 = vmul.f32 %v828, 0.16666667
        %v833 = vmul.f32 %v829, 0.16666667
        %834 = vst [vmem:[%s458] sm:$0xff] %v830
        %835 = vst [vmem:[%s458 + $0x8] sm:$0xff] %v831
        %836 = vst [vmem:[%s458 + $0x10] sm:$0xff] %v832
        %837 = vst [vmem:[%s458 + $0x18] sm:$0xff] %v833
        %s838 = sand.u32 %s329, 1
        %s839 = scalar_lea.sflag [#allocation3], %s838
        %s840 = sand.u32 %s329, 1
        %s841 = smul.addr %s840, 32
        %s842 = scalar_lea.vmem [#allocation2], %s841
        // Predicated region
        $region73: #{tpu_custom_call.1} parent=71 // pred_check
          %p843 = pneg %p339
        $region74: #{tpu_custom_call.1} parent=71 // pred_check_branch
          %845 = sbr.rel (%p843) target = $region76
        $region75: #{tpu_custom_call.1} parent=71 // pred_region
          %s846 = smul.u32 2, %s32
          %848 = vsyncadd %s839, 0
          %s849 = smul.addr %s31, 4
          %s850 = sadd.s32 %s846, %s849
          %s851 = smul.addr %s850, 8
          %s852 = scalar_lea.hbm %s13, %s851
          %s853 = sshll.u32 %s842, 4
          %s854 = int_to_ptr.vmem [resolvable:$true] %s853
          %s855 = sshll.u32 %s852, 4
          %s856 = int_to_ptr.hbm [resolvable:$true] %s855
          %861 = dma.vmem_to_hbm [thread:$0]  %s854, 512, %s856, %s839, 256, 256, 16
        $region76: #{tpu_custom_call.1} parent=71 // pred_fallthru
          _
      $region72: #{tpu_custom_call.1} parent=5 // pred_fallthru
        _
      %p862 = scmp.le.s32.totalorder 2, %s22
      // Predicated region
      $region77: #{tpu_custom_call.1} parent=5 // pred_check
        %p863 = pneg %p862
      $region78: #{tpu_custom_call.1} parent=5 // pred_check_branch
        %865 = sbr.rel (%p863) target = $region80
      $region79: #{tpu_custom_call.1} parent=5 // pred_region
        %s866 = ssub.s32 %s22, 2
        // Predicated region
        $region81: #{tpu_custom_call.1} parent=79 // pred_check
          %p867 = pneg %p345
        $region82: #{tpu_custom_call.1} parent=79 // pred_check_branch
          %869 = sbr.rel (%p867) target = $region84
        $region83: #{tpu_custom_call.1} parent=79 // pred_region
          %s870 = sand.u32 %s330, 1
          %s871 = scalar_lea.sflag [#allocation3], %s870
          %s872 = sand.u32 %s330, 1
          %s873 = smul.addr %s872, 32
          %s874 = scalar_lea.vmem [#allocation2], %s873
          %876 = dma.done %s871, 512
        $region84: #{tpu_custom_call.1} parent=79 // pred_fallthru
          _
      $region80: #{tpu_custom_call.1} parent=5 // pred_fallthru
        _
    $region6: #{tpu_custom_call.1} parent=1 // loop_footer
      %s26 = sadd.s32 1, %s22
    $region7: #{tpu_custom_call.1} parent=1 // loop_footer_branch
      %21 = sbr.rel target = $region3
    $region8: #{tpu_custom_call.1} parent=1 // loop_exit
      _
    %877 = vsyncpa [#allocation3], 1
    %s878 = scalar_lea.sflag [#allocation3], 1
    %879 = vsyncpa %s878, 1

</llo_original>
